<compile_context>
chip_gen: v5e
topology: v5e:2x2
jax: 0.10.0
libtpu: 0.0.40
codegen_flags: <defaults>
</compile_context>

<pallas_src>
import functools

import jax
import jax.numpy as jnp
from jax.experimental import pallas as pl
from jax.experimental.pallas import tpu as pltpu

LANES = 128
SUBLANES = 8
MAX_TILE_ROWS = 1024  # 1024 x 128 f32 = 512 KiB per tile (1 MiB double-buffered)


def _uniform_kernel(seed_ref, params_ref, out_ref):
    # seed_ref:   SMEM int32[1]   (non-negative, derived from the JAX key)
    # params_ref: SMEM f32[3]     = [lo, scale=(hi-lo)/2^24, hi_exclusive]
    lo = params_ref[0]
    scale = params_ref[1]
    hi_excl = params_ref[2]
    seed = seed_ref[0].astype(jnp.uint32)

    tile_rows, lanes = out_ref.shape

    # Globally unique linear element index -> independent streams per tile /
    # per TensorCore without any stateful PRNG.
    base = (pl.program_id(0) * (tile_rows * lanes)).astype(jnp.uint32)
    row = jax.lax.broadcasted_iota(jnp.int32, (tile_rows, lanes), 0)
    col = jax.lax.broadcasted_iota(jnp.int32, (tile_rows, lanes), 1)
    idx = (row * lanes + col).astype(jnp.uint32)

    # Fibonacci-hash spread + murmur3 fmix32 finalizer (pure VPU int ops).
    x = (idx + base + seed) * jnp.uint32(0x9E3779B9)
    x = x ^ (x >> jnp.uint32(16))
    x = x * jnp.uint32(0x85EBCA6B)
    x = x ^ (x >> jnp.uint32(13))
    x = x * jnp.uint32(0xC2B2AE35)
    x = x ^ (x >> jnp.uint32(16))

    # Top 24 bits -> exact f32 integer in [0, 2^24); one fused mul+add maps
    # it into [lo, hi); clamp guarantees strictly < hi even under rounding.
    u24 = (x >> jnp.uint32(8)).astype(jnp.int32).astype(jnp.float32)
    out_ref[...] = jnp.minimum(u24 * scale + lo, hi_excl)


@functools.partial(jax.jit, static_argnames=("size",))
def uniform_sample(key_data, min_param, max_param, size):
    """Pallas equivalent of Uniform.forward(size).

    key_data:   uint32[k] raw key bits (from jax.random key)
    min_param:  f32[1] learnable low  (torch.nn.Parameter analogue)
    max_param:  f32[1] learnable high (torch.nn.Parameter analogue)
    size:       tuple of ints (output shape)
    """
    total = 1
    for s in size:
        total *= int(s)
    total = max(int(total), 1)

    # Flatten/pad to a lane-dense (rows, 128) slab, rows multiple of the tile.
    rows = (total + LANES - 1) // LANES
    rows = max(rows, SUBLANES)
    rows = ((rows + SUBLANES - 1) // SUBLANES) * SUBLANES
    tile_rows = min(MAX_TILE_ROWS, rows)
    num_tiles = (rows + tile_rows - 1) // tile_rows
    padded_rows = num_tiles * tile_rows

    # Scalar seed derived straight from the key bits (no extra RNG kernel).
    seed_u32 = key_data[0] ^ (key_data[-1] * jnp.uint32(0x9E3779B9))
    seed = (seed_u32 & jnp.uint32(0x7FFFFFFF)).astype(jnp.int32).reshape(1)

    lo = min_param.reshape(-1)[0].astype(jnp.float32)
    hi = max_param.reshape(-1)[0].astype(jnp.float32)
    scale = (hi - lo) * jnp.float32(1.0 / (1 << 24))
    hi_excl = jax.lax.nextafter(hi, lo)  # largest representable value < hi
    params = jnp.stack([lo, scale, hi_excl]).astype(jnp.float32)

    slab = pl.pallas_call(
        _uniform_kernel,
        out_shape=jax.ShapeDtypeStruct((padded_rows, LANES), jnp.float32),
        grid=(num_tiles,),
        in_specs=[
            pl.BlockSpec(memory_space=pltpu.MemorySpace.SMEM),  # seed
            pl.BlockSpec(memory_space=pltpu.MemorySpace.SMEM),  # params
        ],
        out_specs=pl.BlockSpec((tile_rows, LANES), lambda i: (i, 0)),
        compiler_params=pltpu.CompilerParams(
            dimension_semantics=("parallel",)),
    )(seed, params)

    if padded_rows * LANES == total:
        return slab.reshape(size)          # metadata-only reshape, no copy
    return slab.reshape(-1)[:total].reshape(size)


class UniformPallas:
    """Mirror of the torch `Uniform(Distribution)` module (forward only)."""

    def __init__(self, value_range=(0.0, 1.0), do_rsample=False):
        # deterministic parameter init straight from __init__ semantics
        self.min = jnp.asarray([value_range[0]], dtype=jnp.float32)
        self.max = jnp.asarray([value_range[1]], dtype=jnp.float32)
        self.do_rsample = do_rsample
        # TODO(synk): rsample differs from sample only in autodiff
        # (reparameterized gradient), not in forward values; forward only here.

    def forward(self, size=1, key=None):
        if key is None:
            key = jax.random.PRNGKey(0)
        if not hasattr(size, "__len__"):
            size = (int(size),)
        key = key if isinstance(key, jax.Array) else jnp.asarray(key)
        if jnp.issubdtype(key.dtype, jax.dtypes.prng_key):
            kd = jax.random.key_data(key)
        else:
            kd = key
        kd = kd.reshape(-1).astype(jnp.uint32)
        return uniform_sample(kd, self.min, self.max,
                              tuple(int(s) for s in size))

    __call__ = forward


if __name__ == "__main__":
    key = jax.random.PRNGKey(0)

    dist = UniformPallas(value_range=(0.0, 1.0), do_rsample=False)
    size = (2, 4, 16, 16)  # TensorSize to sample
    out = dist(size, key=key)
    out = jax.block_until_ready(out)

    assert out.shape == size, out.shape
    assert out.dtype == jnp.float32, out.dtype
    assert bool(jnp.all(out >= 0.0)) and bool(jnp.all(out < 1.0)), "out of range"
    assert float(jnp.std(out)) > 0.1, "samples not dispersed"

    # shifted/scaled range, tail-padded case
    dist2 = UniformPallas(value_range=(-3.0, 5.0))
    out2 = jax.block_until_ready(dist2((8,), key=jax.random.PRNGKey(1)))
    assert out2.shape == (8,)
    assert bool(jnp.all(out2 >= -3.0)) and bool(jnp.all(out2 < 5.0))

    # multi-tile grid path (2 tiles of 1024 rows) — tiles must differ
    out3 = jax.block_until_ready(dist((4, 512, 128), key=jax.random.PRNGKey(2)))
    flat3 = out3.reshape(-1)
    half = flat3.shape[0] // 2
    assert not bool(jnp.array_equal(flat3[:half], flat3[half:])), "identical tiles"
    assert bool(jnp.all(out3 >= 0.0)) and bool(jnp.all(out3 < 1.0))

    print("KERNEL_OK")
</pallas_src>

<mosaic_0001>
module attributes {stable_mosaic.version = 11 : i64} {
  func.func @_uniform_kernel(%arg0: i32, %arg1: memref<1xi32, #tpu.memory_space<smem>>, %arg2: memref<3xf32, #tpu.memory_space<smem>>, %arg3: memref<16x128xf32, #tpu.memory_space<vmem>>) attributes {dimension_semantics = [#tpu.dimension_semantics<parallel>], iteration_bounds = array<i64: 1>, scalar_prefetch = 0 : i64, scratch_operands = 0 : i64, tpu.core_type = #tpu.core_type<tc>, window_params = [{transform_indices = @transform_0, window_bounds = array<i64: 1>}, {transform_indices = @transform_1, window_bounds = array<i64: 3>}, {transform_indices = @transform_2, window_bounds = array<i64: 16, 128>}]} {
    %c0 = arith.constant 0 : index
    %0 = memref.load %arg2[%c0] : memref<3xf32, #tpu.memory_space<smem>>
    %c1 = arith.constant 1 : index
    %1 = memref.load %arg2[%c1] : memref<3xf32, #tpu.memory_space<smem>>
    %c2 = arith.constant 2 : index
    %2 = memref.load %arg2[%c2] : memref<3xf32, #tpu.memory_space<smem>>
    %c0_0 = arith.constant 0 : index
    %3 = memref.load %arg1[%c0_0] : memref<1xi32, #tpu.memory_space<smem>>
    %c2048_i32 = arith.constant 2048 : i32
    %4 = arith.muli %arg0, %c2048_i32 : i32
    %5 = tpu.iota {dimensions = array<i32: 0>} : vector<16x128xi32>
    %6 = tpu.iota {dimensions = array<i32: 1>} : vector<16x128xi32>
    %c128_i32 = arith.constant 128 : i32
    %7 = vector.broadcast %c128_i32 : i32 to vector<16x128xi32>
    %8 = arith.muli %5, %7 : vector<16x128xi32>
    %9 = arith.addi %8, %6 : vector<16x128xi32>
    %10 = vector.broadcast %4 : i32 to vector<16x128xi32>
    %11 = arith.addi %9, %10 : vector<16x128xi32>
    %12 = vector.broadcast %3 : i32 to vector<16x128xi32>
    %13 = arith.addi %11, %12 : vector<16x128xi32>
    %c-1640531527_i32 = arith.constant -1640531527 : i32
    %14 = vector.broadcast %c-1640531527_i32 : i32 to vector<16x128xi32>
    %15 = arith.muli %13, %14 : vector<16x128xi32>
    %c16_i32 = arith.constant 16 : i32
    %16 = vector.broadcast %c16_i32 : i32 to vector<16x128xi32>
    %17 = arith.shrui %15, %16 : vector<16x128xi32>
    %18 = arith.xori %15, %17 : vector<16x128xi32>
    %c-2048144789_i32 = arith.constant -2048144789 : i32
    %19 = vector.broadcast %c-2048144789_i32 : i32 to vector<16x128xi32>
    %20 = arith.muli %18, %19 : vector<16x128xi32>
    %c13_i32 = arith.constant 13 : i32
    %21 = vector.broadcast %c13_i32 : i32 to vector<16x128xi32>
    %22 = arith.shrui %20, %21 : vector<16x128xi32>
    %23 = arith.xori %20, %22 : vector<16x128xi32>
    %c-1028477387_i32 = arith.constant -1028477387 : i32
    %24 = vector.broadcast %c-1028477387_i32 : i32 to vector<16x128xi32>
    %25 = arith.muli %23, %24 : vector<16x128xi32>
    %c16_i32_1 = arith.constant 16 : i32
    %26 = vector.broadcast %c16_i32_1 : i32 to vector<16x128xi32>
    %27 = arith.shrui %25, %26 : vector<16x128xi32>
    %28 = arith.xori %25, %27 : vector<16x128xi32>
    %c8_i32 = arith.constant 8 : i32
    %29 = vector.broadcast %c8_i32 : i32 to vector<16x128xi32>
    %30 = arith.shrui %28, %29 : vector<16x128xi32>
    %31 = arith.sitofp %30 : vector<16x128xi32> to vector<16x128xf32>
    %32 = vector.broadcast %1 : f32 to vector<16x128xf32>
    %33 = arith.mulf %31, %32 : vector<16x128xf32>
    %34 = vector.broadcast %0 : f32 to vector<16x128xf32>
    %35 = arith.addf %33, %34 : vector<16x128xf32>
    %36 = vector.broadcast %2 : f32 to vector<16x128xf32>
    %37 = arith.minimumf %35, %36 : vector<16x128xf32>
    %c0_2 = arith.constant 0 : index
    %c0_3 = arith.constant 0 : index
    %38 = vector.load %arg3[%c0_2, %c0_3] : memref<16x128xf32, #tpu.memory_space<vmem>>, vector<16x128xf32>
    tpu.vector_store %arg3[%c0_2, %c0_3], %37 {strides = array<i32>} : memref<16x128xf32, #tpu.memory_space<vmem>>, vector<16x128xf32>,
    return
  }
  func.func @transform_0(%arg0: i32) -> i32 {
    %c0_i32 = arith.constant 0 : i32
    %c0_i32_0 = arith.constant 0 : i32
    return %c0_i32 : i32
  }
  func.func @transform_1(%arg0: i32) -> i32 {
    %c0_i32 = arith.constant 0 : i32
    %c0_i32_0 = arith.constant 0 : i32
    return %c0_i32 : i32
  }
  func.func @transform_2(%arg0: i32) -> (i32, i32) {
    %c0_i32 = arith.constant 0 : i32
    %c0_i32_0 = arith.constant 0 : i32
    return %arg0, %c0_i32 : i32, i32
  }
}

</mosaic_0001>

<llo_original>
// kernel: uniform_sample.1
$region0: #{uniform_sample.1}
  #allocation0 [shape = 'u32[]', space=smem, size = 0x4, offset = 0x4, fixed_abs, tag = 'smem constant byte address 0x4 - core index']
  #allocation1 [shape = 'u32[72,128]{1,0:T(1,128)}', space=vmem, size = 0x9000, scoped, tag = 'internal scratch']
  #allocation2 [shape = 's32[1]{0:T(128)S(6)}', space=smem, size = 0x200, scoped, tag = 'scoped memory for uniform_sample.1']
  %s0 = inlined_call_operand.<no memory space> [shape: s32[1], index: 0, kind: input, shape index: {}]
  %s1 = inlined_call_operand.vmem [shape: f32[3], index: 1, kind: input, shape index: {}]
  %s2 = inlined_call_operand.vmem [shape: f32[16,128], index: 2, kind: output, shape index: {}]
  %s3 = sld [smem:[#allocation0]]
  $region22: #{uniform_sample.1} parent=0
    _
  %s5 = ssub.s32 1, %s3
  %s6 = scalar_select 0, %s5, %s3
  %7 = sst [smem:[#allocation2]] %s0
  $region1: #{uniform_sample.1} parent=0
    #allocation3 [shape = 'u8[512]{0}', space=smem, size = 0x200, scoped, tag = 'input window, operand 1, single buffered']
    #allocation4 [shape = 's32[1]{0}', space=sflag, size = 0x4, scoped, tag = 'scoped memory for uniform_sample.1']
    %8 = vsyncpa [#allocation4], 0
    // Predicated region
    $region2: #{uniform_sample.1} parent=1 // pred_check
      _
    $region3: #{uniform_sample.1} parent=1 // pred_check_branch
      %10 = sbr.rel (0) target = $region5
    $region4: #{uniform_sample.1} parent=1 // pred_region
      _
    $region5: #{uniform_sample.1} parent=1 // pred_fallthru
      _
    // Predicated region
    $region6: #{uniform_sample.1} parent=1 // pred_check
      _
    $region7: #{uniform_sample.1} parent=1 // pred_check_branch
      %12 = sbr.rel (0) target = $region9
    $region8: #{uniform_sample.1} parent=1 // pred_region
      %14 = vsyncadd [#allocation4], 0
      %s16 = sshll.u32 %s1, 4
      %s17 = int_to_ptr.vmem [resolvable:$true] %s16
      %19 = dma.vmem_to_smem %s17, 16, [#allocation3], [#allocation4]
    $region9: #{uniform_sample.1} parent=1 // pred_fallthru
      _
    // Predicated region
    $region10: #{uniform_sample.1} parent=1 // pred_check
      _
    $region11: #{uniform_sample.1} parent=1 // pred_check_branch
      %21 = sbr.rel (0) target = $region13
    $region12: #{uniform_sample.1} parent=1 // pred_region
      %23 = dma.done [#allocation4], 16
    $region13: #{uniform_sample.1} parent=1 // pred_fallthru
      _
    %24 = sfence
    %s25 = sld [smem:[#allocation3]]
    %s26 = sld [smem:[#allocation3 + $0x1]]
    %s27 = sld [smem:[#allocation3 + $0x2]]
    %s28 = sld [smem:[#allocation2]]
    %s29 = smul.u32 0, 2048
    %v30 = vlaneseq
    %v31 = vshrl.u32 %v30, 7
    %v32 = vadd.s32 %v31, 8
    %v33 = vlaneseq
    %v34 = vand.u32 %v33, 127
    %v35 = vmul.u32 %v31, 128
    %v36 = vmul.u32 %v32, 128
    %v37 = vadd.s32 %v35, %v34
    %v38 = vadd.s32 %v36, %v34
    %v39 = vstv %s29
    %v40 = vadd.s32 %v37, %v39
    %v41 = vadd.s32 %v38, %v39
    %v42 = vstv %s28
    %v43 = vadd.s32 %v40, %v42
    %v44 = vadd.s32 %v41, %v42
    %v45 = vmul.u32 %v43, 2654435769
    %v46 = vmul.u32 %v44, 2654435769
    %v47 = vshrl.u32 %v45, 16
    %v48 = vshrl.u32 %v46, 16
    %v49 = vxor.u32 %v45, %v47
    %v50 = vxor.u32 %v46, %v48
    %v51 = vmul.u32 %v49, 2246822507
    %v52 = vmul.u32 %v50, 2246822507
    %v53 = vshrl.u32 %v51, 13
    %v54 = vshrl.u32 %v52, 13
    %v55 = vxor.u32 %v51, %v53
    %v56 = vxor.u32 %v52, %v54
    %v57 = vmul.u32 %v55, 3266489909
    %v58 = vmul.u32 %v56, 3266489909
    %v59 = vshrl.u32 %v57, 16
    %v60 = vshrl.u32 %v58, 16
    %v61 = vxor.u32 %v57, %v59
    %v62 = vxor.u32 %v58, %v60
    %v63 = vshrl.u32 %v61, 8
    %v64 = vshrl.u32 %v62, 8
    %v65 = vcvt.s32.f32 %v63
    %v66 = vcvt.s32.f32 %v64
    %v67 = vstv %s26
    %v68 = vmul.f32 %v65, %v67
    %v69 = vmul.f32 %v66, %v67
    %v70 = vstv %s25
    %v71 = vadd.f32 %v68, %v70
    %v72 = vadd.f32 %v69, %v70
    %v73 = vstv %s27
    %v74 = vmin.f32 %v71, %v73
    %v75 = vmin.f32 %v72, %v73
    %76 = vst [vmem:[%s2] sm:$0xff] %v74
    %77 = vst [vmem:[%s2 + $0x8] sm:$0xff] %v75
    // Predicated region
    $region14: #{uniform_sample.1} parent=1 // pred_check
      _
    $region15: #{uniform_sample.1} parent=1 // pred_check_branch
      %79 = sbr.rel (0) target = $region17
    $region16: #{uniform_sample.1} parent=1 // pred_region
      _
    $region17: #{uniform_sample.1} parent=1 // pred_fallthru
      _
    // Predicated region
    $region18: #{uniform_sample.1} parent=1 // pred_check
      _
    $region19: #{uniform_sample.1} parent=1 // pred_check_branch
      %81 = sbr.rel (0) target = $region21
    $region20: #{uniform_sample.1} parent=1 // pred_region
      _
    $region21: #{uniform_sample.1} parent=1 // pred_fallthru
      _
    %82 = vsyncpa [#allocation4], 1

</llo_original>
